<compile_context>
chip_gen: v6e
topology: v6e:2x2x1
jax: 0.10.0
libtpu: 0.0.40
codegen_flags: <defaults>
</compile_context>

<pallas_src>
import numpy as np
import jax
import jax.numpy as jnp
from jax.experimental import pallas as pl
from jax.experimental.pallas import tpu as pltpu

# ---------------- synthetic "args" ----------------
X_VARS = ["u", "v", "p"]                                   # input_dim = 3
PHI = [[1, 0, 0], [0, 1, 0], [0, 0, 1], [1, 1, 0]]         # reduce_inputs -> 4 features
SAMPLING_BOX = [(-2.0, 2.0), (-2.0, 2.0), (-2.0, 2.0), (-4.0, 4.0)]
LAYERS = [32, 32]
OUTPUT_DIM = 2                                             # kind != 'incompressible'
LN_EPS = 1e-5
ACT = jnp.tanh                                             # args.act = 'Tanh'

H = LAYERS[0]          # hidden width (32)
NPHI = len(PHI)        # 4 transformed features
NX = len(X_VARS)       # 3 raw inputs


def _round_up(x, m):
    return ((x + m - 1) // m) * m


# --------------------------- kernel -------------------------------
# Lane-dense layout: batch is the last (lane) dim everywhere.
#   x_ref  : (3,  T)   rows = u, v, p
#   p1_ref : (32, 42)  packed slab: [W2c | W1c | b1c g1 be1 b2c g2 be2]
#   p2_ref : (2,  33)  packed slab: [W3 | b3]
#   o_ref  : (2,  T)
#   f_ref  : (4,  T)   VMEM scratch for the transformed features [u, v, p, u*v]
def nn_kernel(x_ref, p1_ref, p2_ref, o_ref, f_ref):
    x = x_ref[...]                                          # (3, T)

    # Stage [u, v, p, u*v] so the whole first layer (incl. the non-linear phi
    # monomial) runs as a single MXU matmul.
    f_ref[0:NX, :] = x
    f_ref[NX:NX + 1, :] = x[0:1, :] * x[1:2, :]
    feats = f_ref[...]                                      # (4, T)

    # Static slices of the packed parameter slabs.
    w2  = p1_ref[:, 0:H]                                    # (32, 32) centered
    w1  = p1_ref[:, H:H + NPHI]                             # (32, 4)  folded + centered
    b1  = p1_ref[:, H + NPHI + 0:H + NPHI + 1]              # (32, 1)
    g1  = p1_ref[:, H + NPHI + 1:H + NPHI + 2]
    be1 = p1_ref[:, H + NPHI + 2:H + NPHI + 3]
    b2  = p1_ref[:, H + NPHI + 3:H + NPHI + 4]
    g2  = p1_ref[:, H + NPHI + 4:H + NPHI + 5]
    be2 = p1_ref[:, H + NPHI + 5:H + NPHI + 6]
    w3  = p2_ref[:, 0:H]                                    # (2, 32)
    b3  = p2_ref[:, H:H + 1]                                # (2, 1)

    inv_h = jnp.full((1, H), 1.0 / H, jnp.float32)          # MXU row for LN variance

    def ln_act(z, g, be):
        # LN mean was folded into the preceding Linear (weights centered over
        # the output-feature axis), so z is already zero-mean over features.
        # Only the variance reduce remains, done on the (idle) MXU.
        var = jnp.dot(inv_h, z * z, preferred_element_type=jnp.float32)   # (1, T)
        return ACT(z * jax.lax.rsqrt(var + LN_EPS) * g + be)

    # ---- Linear(4,32) (+NORMALIZE fold, mean-centered) -> LN -> Tanh ----
    h = ln_act(jnp.dot(w1, feats, preferred_element_type=jnp.float32) + b1, g1, be1)
    # ---- Linear(32,32) (mean-centered) -> LN -> Tanh ----
    h = ln_act(jnp.dot(w2, h, preferred_element_type=jnp.float32) + b2, g2, be2)
    # ---- Linear(32,2) ----
    o_ref[...] = jnp.dot(w3, h, preferred_element_type=jnp.float32) + b3


# --------------------------- wrapper ------------------------------
def _fold_params(params):
    """Fold NORMALIZE (affine) into Linear #1, fold the LayerNorm mean
    subtraction into Linear #1 and #2 (exact), and pack everything into two
    lane-dense parameter slabs."""
    w1, b1, g1, be1, w2, b2, g2, be2, w3, b3 = params

    # NORMALIZE: 6*(f - off)/rng - 3 == scale*f + shift, folded into Linear #1.
    off = jnp.array([mn for (mn, mx) in SAMPLING_BOX], jnp.float32)          # (4,)
    rng = jnp.array([abs(mx - mn) for (mn, mx) in SAMPLING_BOX], jnp.float32)
    scale = 6.0 / rng
    shift = -6.0 * off / rng - 3.0
    w1f = scale[:, None] * w1                       # (4, 32)  (in, out)
    b1f = shift @ w1 + b1.reshape(-1)               # (32,)

    # LayerNorm mean fold: mean_over_out(Wx+b) is linear in x, so subtracting
    # it is exactly using output-centered weights/bias.
    w1c = w1f - jnp.mean(w1f, axis=1, keepdims=True)            # (4, 32)
    b1c = b1f - jnp.mean(b1f)                                   # (32,)
    w2c = w2 - jnp.mean(w2, axis=1, keepdims=True)              # (32, 32)
    b2c = b2.reshape(-1) - jnp.mean(b2)                         # (32,)

    col = lambda v: v.reshape(-1, 1)
    # slab 1: (32, 42) = [W2c | W1c | b1c g1 be1 b2c g2 be2]
    p1 = jnp.concatenate(
        [w2c.T, w1c.T, col(b1c), col(g1), col(be1),
         col(b2c), col(g2), col(be2)], axis=1).astype(jnp.float32)
    # slab 2: (2, 33) = [W3 | b3]
    p2 = jnp.concatenate([w3.T, col(b3)], axis=1).astype(jnp.float32)
    return p1, p2


def nn_forward(x, params, tile_b=8192):
    assert tile_b % 128 == 0
    B = x.shape[0]
    tb = min(tile_b, _round_up(B, 128))            # lane-aligned tile
    # If everything would fit in one tile but the batch is non-trivial, split
    # into two balanced tiles so the 'parallel' axis can shard across the two
    # TensorCores on v7x (and the pipeline has >1 step).
    if B > 2 * 128 and _round_up(B, tb) == tb:
        tb = _round_up(pl.cdiv(B, 2), 128)
    Bp = _round_up(B, tb)
    n_tiles = Bp // tb

    p1, p2 = _fold_params(params)

    # Lane-dense input (features, batch_padded): single fused pad + transpose.
    x_t = jnp.pad(x.astype(jnp.float32), ((0, Bp - B), (0, 0))).T   # (3, Bp)

    flops = 2 * Bp * (NPHI * H + H * H + H * OUTPUT_DIM + 2 * H) + 8 * Bp * H
    transcendentals = Bp * (2 * H + 2)                               # tanh + rsqrt
    bytes_accessed = 4 * (x_t.size + OUTPUT_DIM * Bp + p1.size + p2.size)

    out_t = pl.pallas_call(
        nn_kernel,
        grid=(n_tiles,),
        in_specs=[pl.BlockSpec((NX, tb), lambda i: (0, i)),
                  pl.BlockSpec(p1.shape, lambda i: (0, 0)),
                  pl.BlockSpec(p2.shape, lambda i: (0, 0))],
        out_specs=pl.BlockSpec((OUTPUT_DIM, tb), lambda i: (0, i)),
        out_shape=jax.ShapeDtypeStruct((OUTPUT_DIM, Bp), jnp.float32),
        scratch_shapes=[pltpu.VMEM((NPHI, tb), jnp.float32)],
        compiler_params=pltpu.CompilerParams(
            dimension_semantics=("parallel",),
            # Only mega-tiles (v5e/v6e 128 MiB VMEM) need a raised scoped limit;
            # default tiles stay under the 32 MiB default (safe on v7x too).
            vmem_limit_bytes=(64 * 1024 * 1024 if tb > 8192
                              else 32 * 1024 * 1024)),
        cost_estimate=pl.CostEstimate(flops=flops,
                                      transcendentals=transcendentals,
                                      bytes_accessed=bytes_accessed),
    )(x_t, p1, p2)

    return out_t[:, :B].T                          # back to (B, OUTPUT_DIM)


# ------------------------ init & reference ------------------------
def init_params(key):
    """Deterministic PyTorch-style uniform(-1/sqrt(fan_in), +1/sqrt(fan_in)) init."""
    dims = [NPHI] + LAYERS + [OUTPUT_DIM]          # [4, 32, 32, 2]
    keys = jax.random.split(key, 2 * (len(dims) - 1))
    ps = []
    for i in range(len(dims) - 1):
        fan_in, fan_out = dims[i], dims[i + 1]
        bound = 1.0 / np.sqrt(fan_in)
        w = jax.random.uniform(keys[2 * i], (fan_in, fan_out), jnp.float32,
                               -bound, bound)
        b = jax.random.uniform(keys[2 * i + 1], (1, fan_out), jnp.float32,
                               -bound, bound)
        ps.append((w, b))
    (w1, b1), (w2, b2), (w3, b3) = ps
    g1, be1 = jnp.ones((1, H), jnp.float32), jnp.zeros((1, H), jnp.float32)
    g2, be2 = jnp.ones((1, H), jnp.float32), jnp.zeros((1, H), jnp.float32)
    return (w1, b1, g1, be1, w2, b2, g2, be2, w3, b3)


def nn_reference(x, params):
    """Pure-JAX reference mirroring the PyTorch forward (batch-first layout)."""
    w1, b1, g1, be1, w2, b2, g2, be2, w3, b3 = params
    cols = []
    for l in PHI:
        f = jnp.ones_like(x[:, 0:1])
        for j, k in enumerate(l):
            f = f * x[:, j:j + 1] ** k
        cols.append(f)
    h = jnp.concatenate(cols, axis=1)
    off = jnp.array([mn for (mn, mx) in SAMPLING_BOX], jnp.float32)[None, :]
    rng = jnp.array([abs(mx - mn) for (mn, mx) in SAMPLING_BOX], jnp.float32)[None, :]
    h = 6.0 * (h - off) / rng - 3.0

    def ln(z, g, b):
        mu = jnp.mean(z, axis=-1, keepdims=True)
        var = jnp.mean((z - mu) ** 2, axis=-1, keepdims=True)
        return (z - mu) / jnp.sqrt(var + LN_EPS) * g + b

    h = ACT(ln(h @ w1 + b1, g1, be1))
    h = ACT(ln(h @ w2 + b2, g2, be2))
    return h @ w3 + b3


if __name__ == "__main__":
    key = jax.random.PRNGKey(0)
    k_x, k_x2, k_p = jax.random.split(key, 3)
    params = init_params(k_p)

    # small batch (single 128-wide tile, padded)
    x = jax.random.normal(k_x, (8, NX), jnp.float32)
    out = jax.block_until_ready(nn_forward(x, params))
    np.testing.assert_allclose(np.asarray(out), np.asarray(nn_reference(x, params)),
                               rtol=5e-5, atol=5e-5)

    # non-multiple-of-128 batch; the wrapper splits it into a 2-tile grid
    # (exercises padding + multi-step pipeline + megacore sharding path)
    x2 = jax.random.normal(k_x2, (300, NX), jnp.float32)
    out2 = jax.block_until_ready(nn_forward(x2, params))
    np.testing.assert_allclose(np.asarray(out2), np.asarray(nn_reference(x2, params)),
                               rtol=5e-5, atol=5e-5)

    print("KERNEL_OK")
</pallas_src>

<mosaic_0001>
module attributes {stable_mosaic.version = 11 : i64} {
  func.func @nn_kernel(%arg0: i32, %arg1: memref<3x128xf32, #tpu.memory_space<vmem>>, %arg2: memref<32x42xf32, #tpu.memory_space<vmem>>, %arg3: memref<2x33xf32, #tpu.memory_space<vmem>>, %arg4: memref<2x128xf32, #tpu.memory_space<vmem>>, %arg5: memref<4x128xf32, #tpu.memory_space<vmem>>) attributes {dimension_semantics = [#tpu.dimension_semantics<parallel>], iteration_bounds = array<i64: 1>, scalar_prefetch = 0 : i64, scratch_operands = 1 : i64, tpu.core_type = #tpu.core_type<tc>, window_params = [{transform_indices = @transform_0, window_bounds = array<i64: 3, 128>}, {pipeline_mode = #tpu.pipeline_mode<synchronous>, transform_indices = @transform_1, window_bounds = array<i64: 32, 42>}, {pipeline_mode = #tpu.pipeline_mode<synchronous>, transform_indices = @transform_2, window_bounds = array<i64: 2, 33>}, {transform_indices = @transform_3, window_bounds = array<i64: 2, 128>}]} {
    %c0 = arith.constant 0 : index
    %c0_0 = arith.constant 0 : index
    %0 = vector.load %arg1[%c0, %c0_0] : memref<3x128xf32, #tpu.memory_space<vmem>>, vector<3x128xf32>
    %c0_1 = arith.constant 0 : index
    %c0_2 = arith.constant 0 : index
    %1 = vector.load %arg5[%c0_1, %c0_2] : memref<4x128xf32, #tpu.memory_space<vmem>>, vector<3x128xf32>
    tpu.vector_store %arg5[%c0_1, %c0_2], %0 {strides = array<i32>} : memref<4x128xf32, #tpu.memory_space<vmem>>, vector<3x128xf32>,
    %2 = vector.extract_strided_slice %0 {offsets = [0, 0], sizes = [1, 128], strides = [1, 1]} : vector<3x128xf32> to vector<1x128xf32>
    %3 = vector.extract_strided_slice %0 {offsets = [1, 0], sizes = [1, 128], strides = [1, 1]} : vector<3x128xf32> to vector<1x128xf32>
    %4 = arith.mulf %2, %3 : vector<1x128xf32>
    %c3 = arith.constant 3 : index
    %c0_3 = arith.constant 0 : index
    %5 = vector.load %arg5[%c3, %c0_3] : memref<4x128xf32, #tpu.memory_space<vmem>>, vector<1x128xf32>
    tpu.vector_store %arg5[%c3, %c0_3], %4 {strides = array<i32>} : memref<4x128xf32, #tpu.memory_space<vmem>>, vector<1x128xf32>,
    %c0_4 = arith.constant 0 : index
    %c0_5 = arith.constant 0 : index
    %6 = vector.load %arg5[%c0_4, %c0_5] : memref<4x128xf32, #tpu.memory_space<vmem>>, vector<4x128xf32>
    %c0_6 = arith.constant 0 : index
    %c0_7 = arith.constant 0 : index
    %7 = vector.load %arg2[%c0_6, %c0_7] : memref<32x42xf32, #tpu.memory_space<vmem>>, vector<32x32xf32>
    %c0_8 = arith.constant 0 : index
    %c32 = arith.constant 32 : index
    %8 = vector.load %arg2[%c0_8, %c32] : memref<32x42xf32, #tpu.memory_space<vmem>>, vector<32x4xf32>
    %c0_9 = arith.constant 0 : index
    %c36 = arith.constant 36 : index
    %9 = vector.load %arg2[%c0_9, %c36] : memref<32x42xf32, #tpu.memory_space<vmem>>, vector<32x1xf32>
    %c0_10 = arith.constant 0 : index
    %c37 = arith.constant 37 : index
    %10 = vector.load %arg2[%c0_10, %c37] : memref<32x42xf32, #tpu.memory_space<vmem>>, vector<32x1xf32>
    %c0_11 = arith.constant 0 : index
    %c38 = arith.constant 38 : index
    %11 = vector.load %arg2[%c0_11, %c38] : memref<32x42xf32, #tpu.memory_space<vmem>>, vector<32x1xf32>
    %c0_12 = arith.constant 0 : index
    %c39 = arith.constant 39 : index
    %12 = vector.load %arg2[%c0_12, %c39] : memref<32x42xf32, #tpu.memory_space<vmem>>, vector<32x1xf32>
    %c0_13 = arith.constant 0 : index
    %c40 = arith.constant 40 : index
    %13 = vector.load %arg2[%c0_13, %c40] : memref<32x42xf32, #tpu.memory_space<vmem>>, vector<32x1xf32>
    %c0_14 = arith.constant 0 : index
    %c41 = arith.constant 41 : index
    %14 = vector.load %arg2[%c0_14, %c41] : memref<32x42xf32, #tpu.memory_space<vmem>>, vector<32x1xf32>
    %c0_15 = arith.constant 0 : index
    %c0_16 = arith.constant 0 : index
    %15 = vector.load %arg3[%c0_15, %c0_16] : memref<2x33xf32, #tpu.memory_space<vmem>>, vector<2x32xf32>
    %c0_17 = arith.constant 0 : index
    %c32_18 = arith.constant 32 : index
    %16 = vector.load %arg3[%c0_17, %c32_18] : memref<2x33xf32, #tpu.memory_space<vmem>>, vector<2x1xf32>
    %cst = arith.constant 3.125000e-02 : f32
    %17 = vector.broadcast %cst : f32 to vector<1x32xf32>
    %cst_19 = arith.constant dense<0.000000e+00> : vector<32x128xf32>
    %18 = tpu.matmul %8, %6, %cst_19 {dimension_numbers = #tpu.dot_dimension_numbers<[1], [0], [0], [1], [0, 0, 1, 1], [], []>} : vector<32x4xf32>, vector<4x128xf32>, vector<32x128xf32> -> vector<32x128xf32>
    %19 = vector.broadcast %9 : vector<32x1xf32> to vector<32x128xf32>
    %20 = arith.addf %18, %19 : vector<32x128xf32>
    %21 = arith.mulf %20, %20 : vector<32x128xf32>
    %cst_20 = arith.constant dense<0.000000e+00> : vector<1x128xf32>
    %22 = tpu.matmul %17, %21, %cst_20 {dimension_numbers = #tpu.dot_dimension_numbers<[1], [0], [0], [1], [0, 0, 1, 1], [], []>} : vector<1x32xf32>, vector<32x128xf32>, vector<1x128xf32> -> vector<1x128xf32>
    %cst_21 = arith.constant 9.99999974E-6 : f32
    %23 = vector.broadcast %cst_21 : f32 to vector<1x128xf32>
    %24 = arith.addf %22, %23 : vector<1x128xf32>
    %25 = math.rsqrt %24 : vector<1x128xf32>
    %26 = vector.broadcast %25 : vector<1x128xf32> to vector<32x128xf32>
    %27 = arith.mulf %20, %26 : vector<32x128xf32>
    %28 = vector.broadcast %10 : vector<32x1xf32> to vector<32x128xf32>
    %29 = arith.mulf %27, %28 : vector<32x128xf32>
    %30 = vector.broadcast %11 : vector<32x1xf32> to vector<32x128xf32>
    %31 = arith.addf %29, %30 : vector<32x128xf32>
    %32 = math.tanh %31 : vector<32x128xf32>
    %cst_22 = arith.constant dense<0.000000e+00> : vector<32x128xf32>
    %33 = tpu.matmul %7, %32, %cst_22 {dimension_numbers = #tpu.dot_dimension_numbers<[1], [0], [0], [1], [0, 0, 1, 1], [], []>} : vector<32x32xf32>, vector<32x128xf32>, vector<32x128xf32> -> vector<32x128xf32>
    %34 = vector.broadcast %12 : vector<32x1xf32> to vector<32x128xf32>
    %35 = arith.addf %33, %34 : vector<32x128xf32>
    %36 = arith.mulf %35, %35 : vector<32x128xf32>
    %cst_23 = arith.constant dense<0.000000e+00> : vector<1x128xf32>
    %37 = tpu.matmul %17, %36, %cst_23 {dimension_numbers = #tpu.dot_dimension_numbers<[1], [0], [0], [1], [0, 0, 1, 1], [], []>} : vector<1x32xf32>, vector<32x128xf32>, vector<1x128xf32> -> vector<1x128xf32>
    %cst_24 = arith.constant 9.99999974E-6 : f32
    %38 = vector.broadcast %cst_24 : f32 to vector<1x128xf32>
    %39 = arith.addf %37, %38 : vector<1x128xf32>
    %40 = math.rsqrt %39 : vector<1x128xf32>
    %41 = vector.broadcast %40 : vector<1x128xf32> to vector<32x128xf32>
    %42 = arith.mulf %35, %41 : vector<32x128xf32>
    %43 = vector.broadcast %13 : vector<32x1xf32> to vector<32x128xf32>
    %44 = arith.mulf %42, %43 : vector<32x128xf32>
    %45 = vector.broadcast %14 : vector<32x1xf32> to vector<32x128xf32>
    %46 = arith.addf %44, %45 : vector<32x128xf32>
    %47 = math.tanh %46 : vector<32x128xf32>
    %cst_25 = arith.constant dense<0.000000e+00> : vector<2x128xf32>
    %48 = tpu.matmul %15, %47, %cst_25 {dimension_numbers = #tpu.dot_dimension_numbers<[1], [0], [0], [1], [0, 0, 1, 1], [], []>} : vector<2x32xf32>, vector<32x128xf32>, vector<2x128xf32> -> vector<2x128xf32>
    %49 = vector.broadcast %16 : vector<2x1xf32> to vector<2x128xf32>
    %50 = arith.addf %48, %49 : vector<2x128xf32>
    %c0_26 = arith.constant 0 : index
    %c0_27 = arith.constant 0 : index
    %51 = vector.load %arg4[%c0_26, %c0_27] : memref<2x128xf32, #tpu.memory_space<vmem>>, vector<2x128xf32>
    tpu.vector_store %arg4[%c0_26, %c0_27], %50 {strides = array<i32>} : memref<2x128xf32, #tpu.memory_space<vmem>>, vector<2x128xf32>,
    return
  }
  func.func @transform_0(%arg0: i32) -> (i32, i32) {
    %c0_i32 = arith.constant 0 : i32
    %c0_i32_0 = arith.constant 0 : i32
    return %c0_i32, %arg0 : i32, i32
  }
  func.func @transform_1(%arg0: i32) -> (i32, i32) {
    %c0_i32 = arith.constant 0 : i32
    %c0_i32_0 = arith.constant 0 : i32
    %c0_i32_1 = arith.constant 0 : i32
    return %c0_i32, %c0_i32_0 : i32, i32
  }
  func.func @transform_2(%arg0: i32) -> (i32, i32) {
    %c0_i32 = arith.constant 0 : i32
    %c0_i32_0 = arith.constant 0 : i32
    %c0_i32_1 = arith.constant 0 : i32
    return %c0_i32, %c0_i32_0 : i32, i32
  }
  func.func @transform_3(%arg0: i32) -> (i32, i32) {
    %c0_i32 = arith.constant 0 : i32
    %c0_i32_0 = arith.constant 0 : i32
    return %c0_i32, %arg0 : i32, i32
  }
}

</mosaic_0001>

<llo_original>
// kernel: tpu_custom_call.1
$region0: #{tpu_custom_call.1}
  #allocation0 [shape = 'u32[]', space=smem, size = 0x4, offset = 0x4, fixed_abs, tag = 'smem constant byte address 0x4 - core index']
  #allocation1 [shape = 'u32[144,128]{1,0:T(1,128)}', space=vmem, size = 0x12000, scoped, tag = 'internal scratch']
  #allocation2 [shape = 'f32[4,128]{1,0:T(4,128)}', space=vmem, size = 0x800, scoped, tag = 'scratch operand']
  %s0 = inlined_call_operand.hbm [shape: f32[3,128], index: 0, kind: input, shape index: {}]
  %s1 = inlined_call_operand.hbm [shape: f32[32,42], index: 1, kind: input, shape index: {}]
  %s2 = inlined_call_operand.vmem [shape: f32[2,33], index: 2, kind: input, shape index: {}]
  %s3 = inlined_call_operand.hbm [shape: f32[2,128], index: 3, kind: output, shape index: {}]
  %s4 = sld [smem:[#allocation0]]
  $region30: #{tpu_custom_call.1} parent=0
    _
  %s6 = ssub.s32 1, %s4
  %s7 = scalar_select 0, %s6, %s4
  $region1: #{tpu_custom_call.1} parent=0
    #allocation3 [shape = 'u8[2048]{0}', space=vmem, size = 0x800, scoped, tag = 'input window, operand 0, single buffered']
    #allocation4 [shape = 's32[1]{0}', space=sflag, size = 0x4, scoped, tag = 'scoped memory for tpu_custom_call.1']
    #allocation5 [shape = 's32[1]{0}', space=sflag, size = 0x4, scoped, tag = 'scoped memory for tpu_custom_call.1']
    #allocation6 [shape = 'u8[16384]{0}', space=vmem, size = 0x4000, scoped, tag = 'input window, operand 1, single buffered']
    #allocation7 [shape = 's32[1]{0}', space=sflag, size = 0x4, scoped, tag = 'scoped memory for tpu_custom_call.1']
    #allocation8 [shape = 'u8[1024]{0}', space=vmem, size = 0x400, scoped, tag = 'output window, operand 0, single buffered']
    %8 = vsyncpa [#allocation4], 0
    %9 = vsyncpa [#allocation7], 0
    %10 = vsyncpa [#allocation5], 0
    // Predicated region
    $region2: #{tpu_custom_call.1} parent=1 // pred_check
      _
    $region3: #{tpu_custom_call.1} parent=1 // pred_check_branch
      %12 = sbr.rel (0) target = $region5
    $region4: #{tpu_custom_call.1} parent=1 // pred_region
      %s14 = ssub.s32 64, 64
      %15 = vsyncadd [#allocation4], %s14
      %s17 = sshll.u32 [#allocation3], 4
      %s18 = int_to_ptr.vmem [resolvable:$true] %s17
      %20 = dma.hbm_to_vmem [thread:$0]  %s0, 64, %s18, [#allocation4]
    $region5: #{tpu_custom_call.1} parent=1 // pred_fallthru
      _
    // Predicated region
    $region6: #{tpu_custom_call.1} parent=1 // pred_check
      _
    $region7: #{tpu_custom_call.1} parent=1 // pred_check_branch
      %22 = sbr.rel (0) target = $region9
    $region8: #{tpu_custom_call.1} parent=1 // pred_region
      %s24 = ssub.s32 512, 512
      %25 = vsyncadd [#allocation7], %s24
      %s26 = sshll.u32 [#allocation6], 4
      %s27 = int_to_ptr.vmem [resolvable:$true] %s26
      %32 = dma.hbm_to_vmem [thread:$0]  %s1, 512, %s27, [#allocation7], 128, 128, 8
    $region9: #{tpu_custom_call.1} parent=1 // pred_fallthru
      _
    // Predicated region
    $region10: #{tpu_custom_call.1} parent=1 // pred_check
      _
    $region11: #{tpu_custom_call.1} parent=1 // pred_check_branch
      %34 = sbr.rel (0) target = $region13
    $region12: #{tpu_custom_call.1} parent=1 // pred_region
      _
    $region13: #{tpu_custom_call.1} parent=1 // pred_fallthru
      _
    // Predicated region
    $region14: #{tpu_custom_call.1} parent=1 // pred_check
      _
    $region15: #{tpu_custom_call.1} parent=1 // pred_check_branch
      %36 = sbr.rel (0) target = $region17
    $region16: #{tpu_custom_call.1} parent=1 // pred_region
      %37 = dma.done [#allocation4], 64
    $region17: #{tpu_custom_call.1} parent=1 // pred_fallthru
      _
    // Predicated region
    $region18: #{tpu_custom_call.1} parent=1 // pred_check
      _
    $region19: #{tpu_custom_call.1} parent=1 // pred_check_branch
      %39 = sbr.rel (0) target = $region21
    $region20: #{tpu_custom_call.1} parent=1 // pred_region
      %40 = dma.done [#allocation7], 512
    $region21: #{tpu_custom_call.1} parent=1 // pred_fallthru
      _
    %v41 = vld [vmem:[#allocation3] sm:$0x7]
    %42 = vst [vmem:[#allocation2] sm:$0x7] %v41
    %v44 = vrot.slane %v41, 1
    %v46 = vmul.f32 %v41, %v44
    %47 = vst [vmem:[#allocation2 + $0x3] sm:$0x1] %v46
    %v48 = vld [vmem:[#allocation2] sm:$0xf]
    %v49 = vld [vmem:[#allocation6] sm:$0xff]
    %v50 = vld [vmem:[#allocation6 + $0x8] sm:$0xff]
    %v51 = vld [vmem:[#allocation6 + $0x10] sm:$0xff]
    %v52 = vld [vmem:[#allocation6 + $0x18] sm:$0xff]
    %v53 = vld [vmem:[%s2] sm:$0x3]
    %55 = vset.pattern.permute.xlu0 36
    %56 = vperm.xlu0 %55, %v49
    %v57 = vpop.permute.xlu0 %56
    %60 = vset.pattern.permute.xlu0 36
    %61 = vperm.xlu0 %60, %v50
    %v62 = vpop.permute.xlu0 %61
    %65 = vset.pattern.permute.xlu0 36
    %66 = vperm.xlu0 %65, %v51
    %v67 = vpop.permute.xlu0 %66
    %70 = vset.pattern.permute.xlu0 36
    %71 = vperm.xlu0 %70, %v52
    %v72 = vpop.permute.xlu0 %71
    %74 = vrot.lane.b32.xlu0 %v49, 96
    %v75 = vpop.permute.xlu0 %74
    %76 = vrot.lane.b32.xlu0 %v50, 96
    %v77 = vpop.permute.xlu0 %76
    %78 = vrot.lane.b32.xlu0 %v51, 96
    %v79 = vpop.permute.xlu0 %78
    %80 = vrot.lane.b32.xlu0 %v52, 96
    %v81 = vpop.permute.xlu0 %80
    %vm82 = vcmask 31744
    %v83 = vsel %vm82, %v75, 0
    %v85 = vsel %vm82, %v77, 0
    %v87 = vsel %vm82, %v79, 0
    %v89 = vsel %vm82, %v81, 0
    %vm91 = vcmask 1043456
    %v93 = vsel %vm91, %v48, 0
    %95 = vmatprep.subr.mxu0 0.0
    %96 = vmatpush1.msra.mxu0 0.0
    %97 = vmatprep.subr.mxu0 0.0
    %98 = vmatpush1.msra.mxu0 0.0
    %99 = vmatprep.subr.mxu0 0.0
    %100 = vmatpush1.msra.mxu0 0.0
    %101 = vmatprep.subr.mxu0 0.0
    %102 = vmatpush1.msra.mxu0 0.0
    %103 = vmatprep.subr.mxu0 0.0
    %104 = vmatpush1.msra.mxu0 0.0
    %105 = vmatprep.subr.mxu0 0.0
    %106 = vmatpush1.msra.mxu0 0.0
    %107 = vmatprep.subr.mxu0 0.0
    %108 = vmatpush1.msra.mxu0 0.0
    %109 = vmatprep.subr.mxu0 0.0
    %110 = vmatpush1.msra.mxu0 0.0
    %111 = vmatprep.subr.mxu0 0.0
    %112 = vmatpush1.msra.mxu0 0.0
    %113 = vmatprep.subr.mxu0 0.0
    %114 = vmatpush1.msra.mxu0 0.0
    %115 = vmatprep.subr.mxu0 0.0
    %116 = vmatpush1.msra.mxu0 0.0
    %117 = vmatprep.subr.mxu0 0.0
    %118 = vmatpush1.msra.mxu0 0.0
    %119 = vmatprep.subr.mxu0 0.0
    %120 = vmatpush1.msra.mxu0 0.0
    %121 = vmatprep.subr.mxu0 0.0
    %122 = vmatpush1.msra.mxu0 0.0
    %123 = vmatprep.subr.mxu0 0.0
    %124 = vmatpush1.msra.mxu0 0.0
    %125 = vmatprep.subr.mxu0 0.0
    %126 = vmatpush1.msra.mxu0 %v93
    %127 = vmatprep.subr.mxu0 0.0
    %128 = vmatpush2.msra.mxu0 0.0
    %129 = vmatprep.subr.mxu0 0.0
    %130 = vmatpush2.msra.mxu0 0.0
    %131 = vmatprep.subr.mxu0 0.0
    %132 = vmatpush2.msra.mxu0 0.0
    %133 = vmatprep.subr.mxu0 0.0
    %134 = vmatpush2.msra.mxu0 0.0
    %135 = vmatprep.subr.mxu0 0.0
    %136 = vmatpush2.msra.mxu0 0.0
    %137 = vmatprep.subr.mxu0 0.0
    %138 = vmatpush2.msra.mxu0 0.0
    %139 = vmatprep.subr.mxu0 0.0
    %140 = vmatpush2.msra.mxu0 0.0
    %141 = vmatprep.subr.mxu0 0.0
    %142 = vmatpush2.msra.mxu0 0.0
    %143 = vmatprep.subr.mxu0 0.0
    %144 = vmatpush2.msra.mxu0 0.0
    %145 = vmatprep.subr.mxu0 0.0
    %146 = vmatpush2.msra.mxu0 0.0
    %147 = vmatprep.subr.mxu0 0.0
    %148 = vmatpush2.msra.mxu0 0.0
    %149 = vmatprep.subr.mxu0 0.0
    %150 = vmatpush2.msra.mxu0 0.0
    %151 = vmatprep.subr.mxu0 0.0
    %152 = vmatpush2.msra.mxu0 0.0
    %153 = vmatprep.subr.mxu0 0.0
    %154 = vmatpush2.msra.mxu0 0.0
    %155 = vmatprep.subr.mxu0 0.0
    %156 = vmatpush2.msra.mxu0 0.0
    %157 = vmatprep.subr.mxu0 0.0
    %158 = vmatpush2.msra.mxu0 0.0
    %159 = vmatprep.mubr.f32.mxu0 0.0
    %160 = vmatmul.mubr.f32.gmra.mxu0 %v83
    %v161 = vpop.f32.mrf.mxu0
    %v162 = vadd.f32 %v57, %v161
    %v163 = vpop.f32.mrf.mxu0
    %164 = vmatprep.mubr.f32.mxu0 0.0
    %165 = vmatmul.mubr.f32.gmra.mxu0 %v85
    %v166 = vpop.f32.mrf.mxu0
    %v167 = vadd.f32 %v62, %v166
    %v168 = vpop.f32.mrf.mxu0
    %169 = vmatprep.mubr.f32.mxu0 0.0
    %170 = vmatmul.mubr.f32.gmra.mxu0 %v87
    %v171 = vpop.f32.mrf.mxu0
    %v172 = vadd.f32 %v67, %v171
    %v173 = vpop.f32.mrf.mxu0
    %174 = vmatprep.mubr.f32.mxu0 0.0
    %175 = vmatmul.mubr.f32.gmra.mxu0 %v89
    %v176 = vpop.f32.mrf.mxu0
    %v177 = vadd.f32 %v72, %v176
    %v178 = vpop.f32.mrf.mxu0
    %179 = vdwg.mxu0
    %v180 = vmul.f32 %v162, %v162
    %v181 = vmul.f32 %v167, %v167
    %v182 = vmul.f32 %v172, %v172
    %v183 = vmul.f32 %v177, %v177
    %vm184 = vcmask 261120
    %v186 = vsel %vm184, 0.03125, 0
    %188 = vmatprep.subr.mxu0 0.0
    %189 = vmatpush1.msra.mxu0 0.0
    %190 = vmatprep.subr.mxu0 0.0
    %191 = vmatpush1.msra.mxu0 0.0
    %192 = vmatprep.subr.mxu0 0.0
    %193 = vmatpush1.msra.mxu0 0.0
    %194 = vmatprep.subr.mxu0 0.0
    %195 = vmatpush1.msra.mxu0 0.0
    %196 = vmatprep.subr.mxu0 0.0
    %197 = vmatpush1.msra.mxu0 0.0
    %198 = vmatprep.subr.mxu0 0.0
    %199 = vmatpush1.msra.mxu0 0.0
    %200 = vmatprep.subr.mxu0 0.0
    %201 = vmatpush1.msra.mxu0 0.0
    %202 = vmatprep.subr.mxu0 0.0
    %203 = vmatpush1.msra.mxu0 0.0
    %204 = vmatprep.subr.mxu0 0.0
    %205 = vmatpush1.msra.mxu0 0.0
    %206 = vmatprep.subr.mxu0 0.0
    %207 = vmatpush1.msra.mxu0 0.0
    %208 = vmatprep.subr.mxu0 0.0
    %209 = vmatpush1.msra.mxu0 0.0
    %210 = vmatprep.subr.mxu0 0.0
    %211 = vmatpush1.msra.mxu0 0.0
    %212 = vmatprep.subr.mxu0 0.0
    %213 = vmatpush1.msra.mxu0 %v183
    %214 = vmatprep.subr.mxu0 0.0
    %215 = vmatpush1.msra.mxu0 %v182
    %216 = vmatprep.subr.mxu0 0.0
    %217 = vmatpush1.msra.mxu0 %v181
    %218 = vmatprep.subr.mxu0 0.0
    %219 = vmatpush1.msra.mxu0 %v180
    %220 = vmatprep.subr.mxu0 0.0
    %221 = vmatpush2.msra.mxu0 0.0
    %222 = vmatprep.subr.mxu0 0.0
    %223 = vmatpush2.msra.mxu0 0.0
    %224 = vmatprep.subr.mxu0 0.0
    %225 = vmatpush2.msra.mxu0 0.0
    %226 = vmatprep.subr.mxu0 0.0
    %227 = vmatpush2.msra.mxu0 0.0
    %228 = vmatprep.subr.mxu0 0.0
    %229 = vmatpush2.msra.mxu0 0.0
    %230 = vmatprep.subr.mxu0 0.0
    %231 = vmatpush2.msra.mxu0 0.0
    %232 = vmatprep.subr.mxu0 0.0
    %233 = vmatpush2.msra.mxu0 0.0
    %234 = vmatprep.subr.mxu0 0.0
    %235 = vmatpush2.msra.mxu0 0.0
    %236 = vmatprep.subr.mxu0 0.0
    %237 = vmatpush2.msra.mxu0 0.0
    %238 = vmatprep.subr.mxu0 0.0
    %239 = vmatpush2.msra.mxu0 0.0
    %240 = vmatprep.subr.mxu0 0.0
    %241 = vmatpush2.msra.mxu0 0.0
    %242 = vmatprep.subr.mxu0 0.0
    %243 = vmatpush2.msra.mxu0 0.0
    %244 = vmatprep.subr.mxu0 0.0
    %245 = vmatpush2.msra.mxu0 0.0
    %246 = vmatprep.subr.mxu0 0.0
    %247 = vmatpush2.msra.mxu0 0.0
    %248 = vmatprep.subr.mxu0 0.0
    %249 = vmatpush2.msra.mxu0 0.0
    %250 = vmatprep.subr.mxu0 0.0
    %251 = vmatpush2.msra.mxu0 0.0
    %252 = vmatprep.mubr.f32.mxu0 0.0
    %253 = vmatmul.mubr.f32.gmra.mxu0 %v186
    %v254 = vpop.f32.mrf.mxu0
    %v255 = vadd.f32 1e-05, %v254
    %v256 = vpop.f32.mrf.mxu0
    %257 = vdwg.mxu0
    %v258 = vrsqrt.pop %v255
    %v259 = vlaneseq
    %v260 = vshrl.u32 %v259, 7
    %v261 = vsub.s32 0, %v260
    %v262 = vrot.slane %v258, %v261
    %v263 = vmul.f32 %v162, %v262
    %v264 = vmul.f32 %v167, %v262
    %v265 = vmul.f32 %v172, %v262
    %v266 = vmul.f32 %v177, %v262
    %267 = vset.pattern.permute.xlu0 37
    %268 = vperm.xlu0 %267, %v49
    %v269 = vpop.permute.xlu0 %268
    %271 = vset.pattern.permute.xlu0 37
    %272 = vperm.xlu0 %271, %v50
    %v273 = vpop.permute.xlu0 %272
    %275 = vset.pattern.permute.xlu0 37
    %276 = vperm.xlu0 %275, %v51
    %v277 = vpop.permute.xlu0 %276
    %279 = vset.pattern.permute.xlu0 37
    %280 = vperm.xlu0 %279, %v52
    %v281 = vpop.permute.xlu0 %280
    %v283 = vmul.f32 %v263, %v269
    %v284 = vmul.f32 %v264, %v273
    %v285 = vmul.f32 %v265, %v277
    %v286 = vmul.f32 %v266, %v281
    %287 = vset.pattern.permute.xlu0 38
    %288 = vperm.xlu0 %287, %v49
    %v289 = vpop.permute.xlu0 %288
    %291 = vset.pattern.permute.xlu0 38
    %292 = vperm.xlu0 %291, %v50
    %v293 = vpop.permute.xlu0 %292
    %295 = vset.pattern.permute.xlu0 38
    %296 = vperm.xlu0 %295, %v51
    %v297 = vpop.permute.xlu0 %296
    %299 = vset.pattern.permute.xlu0 38
    %300 = vperm.xlu0 %299, %v52
    %v301 = vpop.permute.xlu0 %300
    %v303 = vadd.f32 %v283, %v289
    %v304 = vadd.f32 %v284, %v293
    %v305 = vadd.f32 %v285, %v297
    %v306 = vadd.f32 %v286, %v301
    %v307 = vtanh.pop %v303
    %v308 = vtanh.pop %v304
    %v309 = vtanh.pop %v305
    %v310 = vtanh.pop %v306
    %311 = vset.pattern.permute.xlu0 39
    %312 = vperm.xlu0 %311, %v49
    %v313 = vpop.permute.xlu0 %312
    %315 = vset.pattern.permute.xlu0 39
    %316 = vperm.xlu0 %315, %v50
    %v317 = vpop.permute.xlu0 %316
    %319 = vset.pattern.permute.xlu0 39
    %320 = vperm.xlu0 %319, %v51
    %v321 = vpop.permute.xlu0 %320
    %323 = vset.pattern.permute.xlu0 39
    %324 = vperm.xlu0 %323, %v52
    %v325 = vpop.permute.xlu0 %324
    %v327 = vsel %vm184, %v49, 0
    %v329 = vsel %vm184, %v50, 0
    %v331 = vsel %vm184, %v51, 0
    %v333 = vsel %vm184, %v52, 0
    %335 = vmatprep.subr.mxu0 0.0
    %336 = vmatpush1.msra.mxu0 0.0
    %337 = vmatprep.subr.mxu0 0.0
    %338 = vmatpush1.msra.mxu0 0.0
    %339 = vmatprep.subr.mxu0 0.0
    %340 = vmatpush1.msra.mxu0 0.0
    %341 = vmatprep.subr.mxu0 0.0
    %342 = vmatpush1.msra.mxu0 0.0
    %343 = vmatprep.subr.mxu0 0.0
    %344 = vmatpush1.msra.mxu0 0.0
    %345 = vmatprep.subr.mxu0 0.0
    %346 = vmatpush1.msra.mxu0 0.0
    %347 = vmatprep.subr.mxu0 0.0
    %348 = vmatpush1.msra.mxu0 0.0
    %349 = vmatprep.subr.mxu0 0.0
    %350 = vmatpush1.msra.mxu0 0.0
    %351 = vmatprep.subr.mxu0 0.0
    %352 = vmatpush1.msra.mxu0 0.0
    %353 = vmatprep.subr.mxu0 0.0
    %354 = vmatpush1.msra.mxu0 0.0
    %355 = vmatprep.subr.mxu0 0.0
    %356 = vmatpush1.msra.mxu0 0.0
    %357 = vmatprep.subr.mxu0 0.0
    %358 = vmatpush1.msra.mxu0 0.0
    %359 = vmatprep.subr.mxu0 0.0
    %360 = vmatpush1.msra.mxu0 %v310
    %361 = vmatprep.subr.mxu0 0.0
    %362 = vmatpush1.msra.mxu0 %v309
    %363 = vmatprep.subr.mxu0 0.0
    %364 = vmatpush1.msra.mxu0 %v308
    %365 = vmatprep.subr.mxu0 0.0
    %366 = vmatpush1.msra.mxu0 %v307
    %367 = vmatprep.subr.mxu0 0.0
    %368 = vmatpush2.msra.mxu0 0.0
    %369 = vmatprep.subr.mxu0 0.0
    %370 = vmatpush2.msra.mxu0 0.0
    %371 = vmatprep.subr.mxu0 0.0
    %372 = vmatpush2.msra.mxu0 0.0
    %373 = vmatprep.subr.mxu0 0.0
    %374 = vmatpush2.msra.mxu0 0.0
    %375 = vmatprep.subr.mxu0 0.0
    %376 = vmatpush2.msra.mxu0 0.0
    %377 = vmatprep.subr.mxu0 0.0
    %378 = vmatpush2.msra.mxu0 0.0
    %379 = vmatprep.subr.mxu0 0.0
    %380 = vmatpush2.msra.mxu0 0.0
    %381 = vmatprep.subr.mxu0 0.0
    %382 = vmatpush2.msra.mxu0 0.0
    %383 = vmatprep.subr.mxu0 0.0
    %384 = vmatpush2.msra.mxu0 0.0
    %385 = vmatprep.subr.mxu0 0.0
    %386 = vmatpush2.msra.mxu0 0.0
    %387 = vmatprep.subr.mxu0 0.0
    %388 = vmatpush2.msra.mxu0 0.0
    %389 = vmatprep.subr.mxu0 0.0
    %390 = vmatpush2.msra.mxu0 0.0
    %391 = vmatprep.subr.mxu0 0.0
    %392 = vmatpush2.msra.mxu0 0.0
    %393 = vmatprep.subr.mxu0 0.0
    %394 = vmatpush2.msra.mxu0 0.0
    %395 = vmatprep.subr.mxu0 0.0
    %396 = vmatpush2.msra.mxu0 0.0
    %397 = vmatprep.subr.mxu0 0.0
    %398 = vmatpush2.msra.mxu0 0.0
    %399 = vmatprep.mubr.f32.mxu0 0.0
    %400 = vmatmul.mubr.f32.gmra.mxu0 %v327
    %v401 = vpop.f32.mrf.mxu0
    %v402 = vadd.f32 %v313, %v401
    %v403 = vpop.f32.mrf.mxu0
    %404 = vmatprep.mubr.f32.mxu0 0.0
    %405 = vmatmul.mubr.f32.gmra.mxu0 %v329
    %v406 = vpop.f32.mrf.mxu0
    %v407 = vadd.f32 %v317, %v406
    %v408 = vpop.f32.mrf.mxu0
    %409 = vmatprep.mubr.f32.mxu0 0.0
    %410 = vmatmul.mubr.f32.gmra.mxu0 %v331
    %v411 = vpop.f32.mrf.mxu0
    %v412 = vadd.f32 %v321, %v411
    %v413 = vpop.f32.mrf.mxu0
    %414 = vmatprep.mubr.f32.mxu0 0.0
    %415 = vmatmul.mubr.f32.gmra.mxu0 %v333
    %v416 = vpop.f32.mrf.mxu0
    %v417 = vadd.f32 %v325, %v416
    %v418 = vpop.f32.mrf.mxu0
    %419 = vdwg.mxu0
    %v420 = vmul.f32 %v402, %v402
    %v421 = vmul.f32 %v407, %v407
    %v422 = vmul.f32 %v412, %v412
    %v423 = vmul.f32 %v417, %v417
    %424 = vmatprep.subr.mxu0 0.0
    %425 = vmatpush1.msra.mxu0 0.0
    %426 = vmatprep.subr.mxu0 0.0
    %427 = vmatpush1.msra.mxu0 0.0
    %428 = vmatprep.subr.mxu0 0.0
    %429 = vmatpush1.msra.mxu0 0.0
    %430 = vmatprep.subr.mxu0 0.0
    %431 = vmatpush1.msra.mxu0 0.0
    %432 = vmatprep.subr.mxu0 0.0
    %433 = vmatpush1.msra.mxu0 0.0
    %434 = vmatprep.subr.mxu0 0.0
    %435 = vmatpush1.msra.mxu0 0.0
    %436 = vmatprep.subr.mxu0 0.0
    %437 = vmatpush1.msra.mxu0 0.0
    %438 = vmatprep.subr.mxu0 0.0
    %439 = vmatpush1.msra.mxu0 0.0
    %440 = vmatprep.subr.mxu0 0.0
    %441 = vmatpush1.msra.mxu0 0.0
    %442 = vmatprep.subr.mxu0 0.0
    %443 = vmatpush1.msra.mxu0 0.0
    %444 = vmatprep.subr.mxu0 0.0
    %445 = vmatpush1.msra.mxu0 0.0
    %446 = vmatprep.subr.mxu0 0.0
    %447 = vmatpush1.msra.mxu0 0.0
    %448 = vmatprep.subr.mxu0 0.0
    %449 = vmatpush1.msra.mxu0 %v423
    %450 = vmatprep.subr.mxu0 0.0
    %451 = vmatpush1.msra.mxu0 %v422
    %452 = vmatprep.subr.mxu0 0.0
    %453 = vmatpush1.msra.mxu0 %v421
    %454 = vmatprep.subr.mxu0 0.0
    %455 = vmatpush1.msra.mxu0 %v420
    %456 = vmatprep.subr.mxu0 0.0
    %457 = vmatpush2.msra.mxu0 0.0
    %458 = vmatprep.subr.mxu0 0.0
    %459 = vmatpush2.msra.mxu0 0.0
    %460 = vmatprep.subr.mxu0 0.0
    %461 = vmatpush2.msra.mxu0 0.0
    %462 = vmatprep.subr.mxu0 0.0
    %463 = vmatpush2.msra.mxu0 0.0
    %464 = vmatprep.subr.mxu0 0.0
    %465 = vmatpush2.msra.mxu0 0.0
    %466 = vmatprep.subr.mxu0 0.0
    %467 = vmatpush2.msra.mxu0 0.0
    %468 = vmatprep.subr.mxu0 0.0
    %469 = vmatpush2.msra.mxu0 0.0
    %470 = vmatprep.subr.mxu0 0.0
    %471 = vmatpush2.msra.mxu0 0.0
    %472 = vmatprep.subr.mxu0 0.0
    %473 = vmatpush2.msra.mxu0 0.0
    %474 = vmatprep.subr.mxu0 0.0
    %475 = vmatpush2.msra.mxu0 0.0
    %476 = vmatprep.subr.mxu0 0.0
    %477 = vmatpush2.msra.mxu0 0.0
    %478 = vmatprep.subr.mxu0 0.0
    %479 = vmatpush2.msra.mxu0 0.0
    %480 = vmatprep.subr.mxu0 0.0
    %481 = vmatpush2.msra.mxu0 0.0
    %482 = vmatprep.subr.mxu0 0.0
    %483 = vmatpush2.msra.mxu0 0.0
    %484 = vmatprep.subr.mxu0 0.0
    %485 = vmatpush2.msra.mxu0 0.0
    %486 = vmatprep.subr.mxu0 0.0
    %487 = vmatpush2.msra.mxu0 0.0
    %488 = vmatprep.mubr.f32.mxu0 0.0
    %489 = vmatmul.mubr.f32.gmra.mxu0 %v186
    %v490 = vpop.f32.mrf.mxu0
    %v491 = vadd.f32 1e-05, %v490
    %v492 = vpop.f32.mrf.mxu0
    %493 = vdwg.mxu0
    %v494 = vrsqrt.pop %v491
    %v495 = vlaneseq
    %v496 = vshrl.u32 %v495, 7
    %v497 = vsub.s32 0, %v496
    %v498 = vrot.slane %v494, %v497
    %v499 = vmul.f32 %v402, %v498
    %v500 = vmul.f32 %v407, %v498
    %v501 = vmul.f32 %v412, %v498
    %v502 = vmul.f32 %v417, %v498
    %503 = vset.pattern.permute.xlu0 40
    %504 = vperm.xlu0 %503, %v49
    %v505 = vpop.permute.xlu0 %504
    %507 = vset.pattern.permute.xlu0 40
    %508 = vperm.xlu0 %507, %v50
    %v509 = vpop.permute.xlu0 %508
    %511 = vset.pattern.permute.xlu0 40
    %512 = vperm.xlu0 %511, %v51
    %v513 = vpop.permute.xlu0 %512
    %515 = vset.pattern.permute.xlu0 40
    %516 = vperm.xlu0 %515, %v52
    %v517 = vpop.permute.xlu0 %516
    %v519 = vmul.f32 %v499, %v505
    %v520 = vmul.f32 %v500, %v509
    %v521 = vmul.f32 %v501, %v513
    %v522 = vmul.f32 %v502, %v517
    %523 = vset.pattern.permute.xlu0 41
    %524 = vperm.xlu0 %523, %v49
    %v525 = vpop.permute.xlu0 %524
    %527 = vset.pattern.permute.xlu0 41
    %528 = vperm.xlu0 %527, %v50
    %v529 = vpop.permute.xlu0 %528
    %531 = vset.pattern.permute.xlu0 41
    %532 = vperm.xlu0 %531, %v51
    %v533 = vpop.permute.xlu0 %532
    %535 = vset.pattern.permute.xlu0 41
    %536 = vperm.xlu0 %535, %v52
    %v537 = vpop.permute.xlu0 %536
    %v539 = vadd.f32 %v519, %v525
    %v540 = vadd.f32 %v520, %v529
    %v541 = vadd.f32 %v521, %v533
    %v542 = vadd.f32 %v522, %v537
    %v543 = vtanh.pop %v539
    %v544 = vtanh.pop %v540
    %v545 = vtanh.pop %v541
    %v546 = vtanh.pop %v542
    %548 = vset.pattern.permute.xlu0 32
    %549 = vperm.xlu0 %548, %v53
    %v550 = vpop.permute.xlu0 %549
    %v552 = vsel %vm184, %v53, 0
    %554 = vmatprep.subr.mxu0 0.0
    %555 = vmatpush1.msra.mxu0 0.0
    %556 = vmatprep.subr.mxu0 0.0
    %557 = vmatpush1.msra.mxu0 0.0
    %558 = vmatprep.subr.mxu0 0.0
    %559 = vmatpush1.msra.mxu0 0.0
    %560 = vmatprep.subr.mxu0 0.0
    %561 = vmatpush1.msra.mxu0 0.0
    %562 = vmatprep.subr.mxu0 0.0
    %563 = vmatpush1.msra.mxu0 0.0
    %564 = vmatprep.subr.mxu0 0.0
    %565 = vmatpush1.msra.mxu0 0.0
    %566 = vmatprep.subr.mxu0 0.0
    %567 = vmatpush1.msra.mxu0 0.0
    %568 = vmatprep.subr.mxu0 0.0
    %569 = vmatpush1.msra.mxu0 0.0
    %570 = vmatprep.subr.mxu0 0.0
    %571 = vmatpush1.msra.mxu0 0.0
    %572 = vmatprep.subr.mxu0 0.0
    %573 = vmatpush1.msra.mxu0 0.0
    %574 = vmatprep.subr.mxu0 0.0
    %575 = vmatpush1.msra.mxu0 0.0
    %576 = vmatprep.subr.mxu0 0.0
    %577 = vmatpush1.msra.mxu0 0.0
    %578 = vmatprep.subr.mxu0 0.0
    %579 = vmatpush1.msra.mxu0 %v546
    %580 = vmatprep.subr.mxu0 0.0
    %581 = vmatpush1.msra.mxu0 %v545
    %582 = vmatprep.subr.mxu0 0.0
    %583 = vmatpush1.msra.mxu0 %v544
    %584 = vmatprep.subr.mxu0 0.0
    %585 = vmatpush1.msra.mxu0 %v543
    %586 = vmatprep.subr.mxu0 0.0
    %587 = vmatpush2.msra.mxu0 0.0
    %588 = vmatprep.subr.mxu0 0.0
    %589 = vmatpush2.msra.mxu0 0.0
    %590 = vmatprep.subr.mxu0 0.0
    %591 = vmatpush2.msra.mxu0 0.0
    %592 = vmatprep.subr.mxu0 0.0
    %593 = vmatpush2.msra.mxu0 0.0
    %594 = vmatprep.subr.mxu0 0.0
    %595 = vmatpush2.msra.mxu0 0.0
    %596 = vmatprep.subr.mxu0 0.0
    %597 = vmatpush2.msra.mxu0 0.0
    %598 = vmatprep.subr.mxu0 0.0
    %599 = vmatpush2.msra.mxu0 0.0
    %600 = vmatprep.subr.mxu0 0.0
    %601 = vmatpush2.msra.mxu0 0.0
    %602 = vmatprep.subr.mxu0 0.0
    %603 = vmatpush2.msra.mxu0 0.0
    %604 = vmatprep.subr.mxu0 0.0
    %605 = vmatpush2.msra.mxu0 0.0
    %606 = vmatprep.subr.mxu0 0.0
    %607 = vmatpush2.msra.mxu0 0.0
    %608 = vmatprep.subr.mxu0 0.0
    %609 = vmatpush2.msra.mxu0 0.0
    %610 = vmatprep.subr.mxu0 0.0
    %611 = vmatpush2.msra.mxu0 0.0
    %612 = vmatprep.subr.mxu0 0.0
    %613 = vmatpush2.msra.mxu0 0.0
    %614 = vmatprep.subr.mxu0 0.0
    %615 = vmatpush2.msra.mxu0 0.0
    %616 = vmatprep.subr.mxu0 0.0
    %617 = vmatpush2.msra.mxu0 0.0
    %618 = vmatprep.mubr.f32.mxu0 0.0
    %619 = vmatmul.mubr.f32.gmra.mxu0 %v552
    %v620 = vpop.f32.mrf.mxu0
    %v621 = vadd.f32 %v550, %v620
    %v622 = vpop.f32.mrf.mxu0
    %623 = vdwg.mxu0
    %624 = vst [vmem:[#allocation8] sm:$0x3] %v621
    // Predicated region
    $region22: #{tpu_custom_call.1} parent=1 // pred_check
      _
    $region23: #{tpu_custom_call.1} parent=1 // pred_check_branch
      %626 = sbr.rel (0) target = $region25
    $region24: #{tpu_custom_call.1} parent=1 // pred_region
      %s628 = ssub.s32 32, 32
      %629 = vsyncadd [#allocation5], %s628
      %s631 = sshll.u32 [#allocation8], 4
      %s632 = int_to_ptr.vmem [resolvable:$true] %s631
      %634 = dma.vmem_to_hbm [thread:$0]  %s632, 32, %s3, [#allocation5]
    $region25: #{tpu_custom_call.1} parent=1 // pred_fallthru
      _
    // Predicated region
    $region26: #{tpu_custom_call.1} parent=1 // pred_check
      _
    $region27: #{tpu_custom_call.1} parent=1 // pred_check_branch
      %636 = sbr.rel (0) target = $region29
    $region28: #{tpu_custom_call.1} parent=1 // pred_region
      %637 = dma.done [#allocation5], 32
    $region29: #{tpu_custom_call.1} parent=1 // pred_fallthru
      _
    %638 = vsyncpa [#allocation4], 1
    %639 = vsyncpa [#allocation7], 1
    %640 = vsyncpa [#allocation5], 1

</llo_original>
